<compile_context>
chip_gen: v6e
topology: v6e:2x2x1
jax: 0.10.0
libtpu: 0.0.40
codegen_flags: <defaults>
</compile_context>

<pallas_src>
import functools
import math

import jax
import jax.numpy as jnp
from jax import lax
from jax.experimental import pallas as pl
from jax.experimental.pallas import tpu as pltpu


def _round_up(x, m):
    return (x + m - 1) // m * m


def _pad_axis(a, axis, new_size):
    if a.shape[axis] == new_size:
        return a
    pads = [(0, 0)] * a.ndim
    pads[axis] = (0, new_size - a.shape[axis])
    return jnp.pad(a, pads)


# --------------------------- parameter preparation ---------------------------

def prepare_dp_lstm_params(w_ih, w_hh, b_ih, b_hh, *, d_pad, h_pad,
                           matmul_dtype=jnp.float32):
    """One-time parameter prep (call OUTSIDE the per-step forward path).

    Returns:
      w_x  : (Dp, 4*Hp)  input projection weight (pre-transposed, padded)
      w_h  : (Hp, 4*Hp)  recurrent weight       (pre-transposed, padded)
      bias : (1, 4*Hp)   fused bias b_ih + b_hh (f32)
    Gate columns are laid out [i | f | g | o], Hp wide each; padded rows /
    columns are zero, hence no-ops.
    """
    four_h, d = w_ih.shape
    h = four_h // 4
    wih_g = _pad_axis(_pad_axis(w_ih.reshape(4, h, d), 1, h_pad), 2, d_pad)
    whh_g = _pad_axis(_pad_axis(w_hh.reshape(4, h, h), 1, h_pad), 2, h_pad)
    w_x = jnp.transpose(wih_g, (2, 0, 1)).reshape(d_pad, 4 * h_pad)
    w_h = jnp.transpose(whh_g, (2, 0, 1)).reshape(h_pad, 4 * h_pad)
    bias = _pad_axis((b_ih + b_hh).reshape(4, h), 1, h_pad).reshape(1, 4 * h_pad)
    return (w_x.astype(matmul_dtype), w_h.astype(matmul_dtype),
            bias.astype(jnp.float32))


# ------------------------- hoisted input projection --------------------------

def _input_proj_kernel(x_ref, w_ref, o_ref):
    o_ref[...] = jnp.dot(x_ref[...], w_ref[...],
                         preferred_element_type=jnp.float32).astype(o_ref.dtype)


def _input_projection(x2d, w_x, *, row_tile=256):
    """xW = x2d @ w_x as a lane-dense MXU GEMM over all T*B rows."""
    M0, K = x2d.shape
    _, N = w_x.shape
    tm = min(row_tile, M0)                 # M0 is a multiple of 8 by construction
    M = _round_up(M0, tm)
    if M != M0:
        x2d = jnp.zeros((M, K), x2d.dtype).at[:M0].set(x2d)
    tn = min(512, N)                       # N = 4*Hp is a multiple of 512

    need = 2 * (tm * K * jnp.dtype(x2d.dtype).itemsize
                + K * tn * jnp.dtype(w_x.dtype).itemsize
                + tm * tn * 4)
    vmem_limit = int(min(128 << 20, max(32 << 20, need + (4 << 20))))

    # TODO(synk): for very large D, add a K grid axis + f32 accumulator scratch
    # (canonical tiled-matmul pattern) instead of loading full-K blocks.
    out = pl.pallas_call(
        _input_proj_kernel,
        out_shape=jax.ShapeDtypeStruct((M, N), jnp.float32),
        grid_spec=pltpu.PrefetchScalarGridSpec(
            num_scalar_prefetch=0,
            grid=(M // tm, N // tn),
            in_specs=[pl.BlockSpec((tm, K), lambda i, j: (i, 0)),
                      pl.BlockSpec((K, tn), lambda i, j: (0, j))],
            out_specs=pl.BlockSpec((tm, tn), lambda i, j: (i, j)),
        ),
        compiler_params=pltpu.CompilerParams(
            dimension_semantics=("parallel", "parallel"),
            vmem_limit_bytes=vmem_limit),
    )(x2d, w_x)
    return out[:M0]


# ----------------------------- recurrent kernel ------------------------------

def _dp_lstm_recurrence_kernel(xw_ref, h0_ref, c0_ref, w_h_ref, b_ref,
                               h_seq_ref, c_out_ref, h_scr, c_scr,
                               *, seq_len, time_block):
    """Runs `time_block` LSTM steps per grid iteration.

    xW (the hoisted input projection), W_h and the fused bias are VMEM-
    resident; h/c are carried across grid steps in VMEM scratch.  One MXU
    matmul per step (h @ W_h), gate nonlinearities on EUP/VPU in f32.
    Note: zero-padded batch rows see gates == bias, so their h/c become
    nonzero over time; they are sliced off by the wrapper — do not reduce
    over the padded batch axis inside this kernel.
    """
    s = pl.program_id(0)

    @pl.when(s == 0)
    def _():
        h_scr[...] = h0_ref[...]
        c_scr[...] = c0_ref[...]

    hp = h_scr.shape[-1]
    w_h = w_h_ref[...]
    bias = b_ref[...]

    def step(i, carry):
        h, c = carry
        gates = jnp.dot(h.astype(w_h.dtype), w_h,
                        preferred_element_type=jnp.float32) + xw_ref[i] + bias
        # Hp is a multiple of 128, so every gate slice is lane-tile aligned.
        # TODO(synk): if the EUP slot binds (small B, large H), replace the
        # sigmoids with 0.5*tanh(0.5*x)+0.5 to halve transcendental pushes.
        i_t = jax.nn.sigmoid(gates[:, 0 * hp:1 * hp])
        f_t = jax.nn.sigmoid(gates[:, 1 * hp:2 * hp])
        g_t = jnp.tanh(gates[:, 2 * hp:3 * hp])
        o_t = jax.nn.sigmoid(gates[:, 3 * hp:4 * hp])
        c_new = f_t * c + i_t * g_t
        h_new = o_t * jnp.tanh(c_new)
        # Mask zero-padded tail timesteps so the carried state stays exact.
        valid = (s * time_block + i) < seq_len
        h_new = jnp.where(valid, h_new, h)
        c_new = jnp.where(valid, c_new, c)
        h_seq_ref[i] = h_new.astype(h_seq_ref.dtype)
        return h_new, c_new

    h, c = lax.fori_loop(0, time_block, step, (h_scr[...], c_scr[...]),
                         unroll=True)
    h_scr[...] = h
    c_scr[...] = c

    # c_T is VMEM-resident (constant index map); write it once, on the last
    # grid step, to avoid burning a store per step on the single vst slot.
    @pl.when(s == pl.num_programs(0) - 1)
    def _():
        c_out_ref[...] = c.astype(c_out_ref.dtype)


def _resident_spec(block_shape, single_buffer):
    """BlockSpec with a constant index map; single-buffered if supported."""
    index_map = lambda s: (0,) * len(block_shape)
    if single_buffer:
        try:
            return pl.BlockSpec(block_shape, index_map,
                                pipeline_mode=pl.Buffered(1))
        except TypeError:       # pipeline_mode not supported on this jax build
            pass
    return pl.BlockSpec(block_shape, index_map)


def dp_lstm_fused_forward(x_seq, h0, c0, w_x, w_h, bias, *, time_block=16):
    """Run the LSTM cell over T timesteps.

    Args:
      x_seq: (T, B, D) activations
      h0,c0: (B, H)    initial state
      w_x, w_h, bias:  from prepare_dp_lstm_params
      time_block: timesteps per grid step (8-32 recommended)
    Returns:
      (h_seq (T, B, H) in x dtype, c_T (B, H) in float32)
    """
    T, B, D = x_seq.shape
    H = h0.shape[-1]
    Dp, four_hp = w_x.shape
    Hp = four_hp // 4
    Bp = _round_up(B, 8)
    tt = max(1, min(time_block, T))
    T_pad = _round_up(T, tt)

    # ---- activation padding (cheap glue; weights were prepped once outside) ----
    if (T_pad, Bp, Dp) != (T, B, D):
        x_p = jnp.zeros((T_pad, Bp, Dp), x_seq.dtype).at[:T, :B, :D].set(x_seq)
    else:
        x_p = x_seq
    h0_p = jnp.zeros((Bp, Hp), jnp.float32).at[:B, :H].set(h0.astype(jnp.float32))
    c0_p = jnp.zeros((Bp, Hp), jnp.float32).at[:B, :H].set(c0.astype(jnp.float32))

    # ---- hoisted input projection: one well-shaped GEMM over T*B rows ----
    # TODO(synk): for very long T*B on v5e (HBM ~0.8 TB/s) consider storing xW
    # in bf16 (or folding x back into the recurrence) to cut HBM traffic.
    xw = _input_projection(x_p.reshape(T_pad * Bp, Dp).astype(w_x.dtype), w_x)
    xw = xw.reshape(T_pad, Bp, four_hp)

    out_dtype = x_seq.dtype
    kernel = functools.partial(_dp_lstm_recurrence_kernel,
                               seq_len=T, time_block=tt)

    # Conservative VMEM budget (assume everything double-buffered) + headroom,
    # so v5e's 16 MiB default scoped limit does not cap the resident design.
    state_b = Bp * Hp * 4
    need = (2 * tt * Bp * four_hp * 4
            + 2 * tt * Bp * Hp * jnp.dtype(out_dtype).itemsize
            + 2 * w_h.size * w_h.dtype.itemsize
            + 2 * bias.size * 4
            + 6 * state_b          # h0, c0, c_out buffers
            + 2 * state_b)         # h/c scratch
    vmem_limit = int(min(128 << 20, max(32 << 20, need + (4 << 20))))

    # TODO(synk): v7x (64 MiB VMEM, 2 TCs): tile the 4*Hp gate axis with an
    # extra grid dim (interleaved per-gate 128-lane column groups) when W_h
    # approaches the VMEM budget, and add a leading "parallel" batch-tile grid
    # axis so the two TensorCores split Bp.
    def call(single_buffer_resident):
        grid_spec = pltpu.PrefetchScalarGridSpec(
            num_scalar_prefetch=0,
            grid=(T_pad // tt,),
            in_specs=[
                pl.BlockSpec((tt, Bp, four_hp), lambda s: (s, 0, 0)),   # xW block
                _resident_spec((Bp, Hp), single_buffer_resident),       # h0
                _resident_spec((Bp, Hp), single_buffer_resident),       # c0
                _resident_spec((Hp, four_hp), single_buffer_resident),  # W_h
                _resident_spec((1, four_hp), single_buffer_resident),   # bias
            ],
            out_specs=(
                pl.BlockSpec((tt, Bp, Hp), lambda s: (s, 0, 0)),        # h_seq
                pl.BlockSpec((Bp, Hp), lambda s: (0, 0)),               # c_T
            ),
            scratch_shapes=[pltpu.VMEM((Bp, Hp), jnp.float32),          # h carry
                            pltpu.VMEM((Bp, Hp), jnp.float32)],         # c carry
        )
        return pl.pallas_call(
            kernel,
            out_shape=(jax.ShapeDtypeStruct((T_pad, Bp, Hp), out_dtype),
                       jax.ShapeDtypeStruct((Bp, Hp), jnp.float32)),
            grid_spec=grid_spec,
            compiler_params=pltpu.CompilerParams(
                dimension_semantics=("arbitrary",),   # carried state -> sequential
                vmem_limit_bytes=vmem_limit),
        )(xw, h0_p, c0_p, w_h, bias)

    try:
        h_seq_p, c_p = call(single_buffer_resident=True)
        jax.block_until_ready((h_seq_p, c_p))
    except Exception:
        # pl.Buffered(1) rejected by this jax/libtpu build -> default buffering.
        h_seq_p, c_p = call(single_buffer_resident=False)

    return h_seq_p[:T, :B, :H], c_p[:B, :H]


def dp_lstm_cell_forward(x_t, h_prev, c_prev, w_ih, w_hh, b_ih, b_hh,
                         matmul_dtype=jnp.float32):
    """Exactly DPLSTMCell.forward: x_t (1,B,D), h/c (1,B,H) -> h_t (B,H).

    Note: for repeated calls, prepare the fused weights once with
    prepare_dp_lstm_params and call dp_lstm_fused_forward directly.
    """
    D = x_t.shape[-1]
    H = h_prev.shape[-1]
    Dp = _round_up(D, 128)       # lane-tile aligned K axis
    Hp = _round_up(H, 128)       # lane-dense gate slices / h_seq writeback
    w_x, w_h, bias = prepare_dp_lstm_params(
        w_ih, w_hh, b_ih, b_hh, d_pad=Dp, h_pad=Hp, matmul_dtype=matmul_dtype)
    h_seq, _c_t = dp_lstm_fused_forward(x_t, h_prev[0], c_prev[0], w_x, w_h, bias)
    return h_seq[0]


# ----------------------------- pure-JAX references -----------------------------

def _reference_cell(x_t, h_prev, c_prev, w_ih, w_hh, b_ih, b_hh):
    gates = (x_t @ w_ih.T + b_ih + h_prev @ w_hh.T + b_hh)[0]   # (B, 4H)
    H = h_prev.shape[-1]
    i_t = jax.nn.sigmoid(gates[:, 0 * H:1 * H])
    f_t = jax.nn.sigmoid(gates[:, 1 * H:2 * H])
    g_t = jnp.tanh(gates[:, 2 * H:3 * H])
    o_t = jax.nn.sigmoid(gates[:, 3 * H:4 * H])
    c_t = f_t * c_prev + i_t * g_t
    h_t = o_t * jnp.tanh(c_t)
    return h_t[0]


def _reference_scan(x_seq, h0, c0, w_ih, w_hh, b_ih, b_hh):
    H = h0.shape[-1]

    def step(carry, x):
        h, c = carry
        gates = x @ w_ih.T + b_ih + h @ w_hh.T + b_hh
        i_t = jax.nn.sigmoid(gates[:, 0 * H:1 * H])
        f_t = jax.nn.sigmoid(gates[:, 1 * H:2 * H])
        g_t = jnp.tanh(gates[:, 2 * H:3 * H])
        o_t = jax.nn.sigmoid(gates[:, 3 * H:4 * H])
        c = f_t * c + i_t * g_t
        h = o_t * jnp.tanh(c)
        return (h, c), h

    (_h_T, c_T), h_seq = jax.lax.scan(step, (h0, c0), x_seq)
    return h_seq, c_T


if __name__ == "__main__":
    input_dim = 16
    hidden = 32
    batch = 2
    seq = 8

    key = jax.random.PRNGKey(0)
    k = jax.random.split(key, 7)

    bound = 1.0 / math.sqrt(hidden)
    w_ih = jax.random.uniform(k[0], (4 * hidden, input_dim), jnp.float32,
                              -bound, bound)
    w_hh = jax.random.uniform(k[1], (4 * hidden, hidden), jnp.float32,
                              -bound, bound)
    b_ih = jax.random.uniform(k[2], (4 * hidden,), jnp.float32, -bound, bound)
    b_hh = jax.random.uniform(k[3], (4 * hidden,), jnp.float32, -bound, bound)

    x_seq = jax.random.normal(k[4], (seq, batch, input_dim), jnp.float32)
    h0 = jax.random.normal(k[5], (batch, hidden), jnp.float32)
    c0 = jax.random.normal(k[6], (batch, hidden), jnp.float32)

    # ---- 1) Module-exact single-step check (DPLSTMCell.forward semantics) ----
    x_t = x_seq[:1]            # (1, B, D)
    h_prev = h0[None]          # (1, B, H)
    c_prev = c0[None]          # (1, B, H)
    h_t = dp_lstm_cell_forward(x_t, h_prev, c_prev, w_ih, w_hh, b_ih, b_hh)
    h_t = jax.block_until_ready(h_t)
    h_ref = _reference_cell(x_t, h_prev, c_prev, w_ih, w_hh, b_ih, b_hh)
    assert h_t.shape == (batch, hidden)
    assert jnp.allclose(h_t, h_ref, atol=1e-4, rtol=1e-4)

    # ---- 2) Fused multi-timestep path (hoisted xW, time-blocked recurrence) ----
    Dp = _round_up(input_dim, 128)
    Hp = _round_up(hidden, 128)
    w_x, w_h, bias = prepare_dp_lstm_params(
        w_ih, w_hh, b_ih, b_hh, d_pad=Dp, h_pad=Hp, matmul_dtype=jnp.float32)
    h_seq, c_T = dp_lstm_fused_forward(x_seq, h0, c0, w_x, w_h, bias,
                                       time_block=16)
    h_seq = jax.block_until_ready(h_seq)
    h_seq_ref, c_T_ref = _reference_scan(x_seq, h0, c0, w_ih, w_hh, b_ih, b_hh)
    assert h_seq.shape == (seq, batch, hidden)
    assert jnp.allclose(h_seq, h_seq_ref, atol=1e-3)
    assert jnp.allclose(c_T, c_T_ref, atol=1e-3)

    # ---- 3) bf16 MXU operands (f32 accumulation + f32 gate math) ----
    # NOTE: bf16 recurrence re-quantizes h each step; error compounds with T.
    w_x16, w_h16, bias16 = prepare_dp_lstm_params(
        w_ih, w_hh, b_ih, b_hh, d_pad=Dp, h_pad=Hp, matmul_dtype=jnp.bfloat16)
    h_seq16, _ = dp_lstm_fused_forward(x_seq, h0, c0, w_x16, w_h16, bias16,
                                       time_block=16)
    h_seq16 = jax.block_until_ready(h_seq16)
    assert jnp.allclose(h_seq16, h_seq_ref, atol=5e-2)

    # TODO(synk): DPLSTMCell.backward (manual gradient path) is not part of the
    # forward pass and is left unimplemented.
    print("KERNEL_OK")
</pallas_src>

<mosaic_0001>
module attributes {stable_mosaic.version = 11 : i64} {
  func.func @_input_proj_kernel(%arg0: i32, %arg1: i32, %arg2: memref<8x128xf32, #tpu.memory_space<vmem>>, %arg3: memref<128x512xf32, #tpu.memory_space<vmem>>, %arg4: memref<8x512xf32, #tpu.memory_space<vmem>>) attributes {dimension_semantics = [#tpu.dimension_semantics<parallel>, #tpu.dimension_semantics<parallel>], iteration_bounds = array<i64: 1, 1>, scalar_prefetch = 0 : i64, scratch_operands = 0 : i64, tpu.core_type = #tpu.core_type<tc>, window_params = [{transform_indices = @transform_0, window_bounds = array<i64: 8, 128>}, {transform_indices = @transform_1, window_bounds = array<i64: 128, 512>}, {transform_indices = @transform_2, window_bounds = array<i64: 8, 512>}]} {
    %c0 = arith.constant 0 : index
    %c0_0 = arith.constant 0 : index
    %0 = vector.load %arg2[%c0, %c0_0] : memref<8x128xf32, #tpu.memory_space<vmem>>, vector<8x128xf32>
    %c0_1 = arith.constant 0 : index
    %c0_2 = arith.constant 0 : index
    %1 = vector.load %arg3[%c0_1, %c0_2] : memref<128x512xf32, #tpu.memory_space<vmem>>, vector<128x512xf32>
    %cst = arith.constant dense<0.000000e+00> : vector<8x512xf32>
    %2 = tpu.matmul %0, %1, %cst {dimension_numbers = #tpu.dot_dimension_numbers<[1], [0], [0], [1], [0, 0, 1, 1], [], []>} : vector<8x128xf32>, vector<128x512xf32>, vector<8x512xf32> -> vector<8x512xf32>
    %c0_3 = arith.constant 0 : index
    %c0_4 = arith.constant 0 : index
    %3 = vector.load %arg4[%c0_3, %c0_4] : memref<8x512xf32, #tpu.memory_space<vmem>>, vector<8x512xf32>
    tpu.vector_store %arg4[%c0_3, %c0_4], %2 {strides = array<i32>} : memref<8x512xf32, #tpu.memory_space<vmem>>, vector<8x512xf32>,
    return
  }
  func.func @transform_0(%arg0: i32, %arg1: i32) -> (i32, i32) {
    %c0_i32 = arith.constant 0 : i32
    %c0_i32_0 = arith.constant 0 : i32
    return %arg0, %c0_i32 : i32, i32
  }
  func.func @transform_1(%arg0: i32, %arg1: i32) -> (i32, i32) {
    %c0_i32 = arith.constant 0 : i32
    %c0_i32_0 = arith.constant 0 : i32
    return %c0_i32, %arg1 : i32, i32
  }
  func.func @transform_2(%arg0: i32, %arg1: i32) -> (i32, i32) {
    %c0_i32 = arith.constant 0 : i32
    return %arg0, %arg1 : i32, i32
  }
}

</mosaic_0001>

<llo_original>
// kernel: tpu_custom_call.1
$region0: #{tpu_custom_call.1}
  #allocation0 [shape = 'u32[]', space=smem, size = 0x4, offset = 0x4, fixed_abs, tag = 'smem constant byte address 0x4 - core index']
  #allocation1 [shape = 'u32[144,128]{1,0:T(1,128)}', space=vmem, size = 0x12000, scoped, tag = 'internal scratch']
  %s0 = inlined_call_operand.hbm [shape: f32[8,128], index: 0, kind: input, shape index: {}]
  %s1 = inlined_call_operand.hbm [shape: f32[128,512], index: 1, kind: input, shape index: {}]
  %s2 = inlined_call_operand.hbm [shape: f32[8,512], index: 2, kind: output, shape index: {}]
  %s3 = sld [smem:[#allocation0]]
  $region26: #{tpu_custom_call.1} parent=0
    _
  %s5 = ssub.s32 1, %s3
  %s6 = scalar_select 0, %s5, %s3
  $region1: #{tpu_custom_call.1} parent=0
    #allocation2 [shape = 'u8[4096]{0}', space=vmem, size = 0x1000, scoped, tag = 'input window, operand 0, single buffered']
    #allocation3 [shape = 's32[1]{0}', space=sflag, size = 0x4, scoped, tag = 'scoped memory for tpu_custom_call.1']
    #allocation4 [shape = 's32[1]{0}', space=sflag, size = 0x4, scoped, tag = 'scoped memory for tpu_custom_call.1']
    #allocation5 [shape = 'u8[262144]{0}', space=vmem, size = 0x40000, scoped, tag = 'input window, operand 1, single buffered']
    #allocation6 [shape = 's32[1]{0}', space=sflag, size = 0x4, scoped, tag = 'scoped memory for tpu_custom_call.1']
    #allocation7 [shape = 'u8[16384]{0}', space=vmem, size = 0x4000, scoped, tag = 'output window, operand 0, single buffered']
    %7 = vsyncpa [#allocation3], 0
    %8 = vsyncpa [#allocation6], 0
    %9 = vsyncpa [#allocation4], 0
    // Predicated region
    $region2: #{tpu_custom_call.1} parent=1 // pred_check
      _
    $region3: #{tpu_custom_call.1} parent=1 // pred_check_branch
      %11 = sbr.rel (0) target = $region5
    $region4: #{tpu_custom_call.1} parent=1 // pred_region
      %s13 = ssub.s32 128, 128
      %14 = vsyncadd [#allocation3], %s13
      %s16 = sshll.u32 [#allocation2], 4
      %s17 = int_to_ptr.vmem [resolvable:$true] %s16
      %19 = dma.hbm_to_vmem [thread:$0]  %s0, 128, %s17, [#allocation3]
    $region5: #{tpu_custom_call.1} parent=1 // pred_fallthru
      _
    // Predicated region
    $region6: #{tpu_custom_call.1} parent=1 // pred_check
      _
    $region7: #{tpu_custom_call.1} parent=1 // pred_check_branch
      %21 = sbr.rel (0) target = $region9
    $region8: #{tpu_custom_call.1} parent=1 // pred_region
      %s23 = ssub.s32 8192, 8192
      %24 = vsyncadd [#allocation6], %s23
      %s25 = sshll.u32 [#allocation5], 4
      %s26 = int_to_ptr.vmem [resolvable:$true] %s25
      %31 = dma.hbm_to_vmem [thread:$0]  %s1, 8192, %s26, [#allocation6], 512, 512, 32
    $region9: #{tpu_custom_call.1} parent=1 // pred_fallthru
      _
    // Predicated region
    $region10: #{tpu_custom_call.1} parent=1 // pred_check
      _
    $region11: #{tpu_custom_call.1} parent=1 // pred_check_branch
      %33 = sbr.rel (0) target = $region13
    $region12: #{tpu_custom_call.1} parent=1 // pred_region
      %34 = dma.done [#allocation3], 128
    $region13: #{tpu_custom_call.1} parent=1 // pred_fallthru
      _
    // Predicated region
    $region14: #{tpu_custom_call.1} parent=1 // pred_check
      _
    $region15: #{tpu_custom_call.1} parent=1 // pred_check_branch
      %36 = sbr.rel (0) target = $region17
    $region16: #{tpu_custom_call.1} parent=1 // pred_region
      %37 = dma.done [#allocation6], 8192
    $region17: #{tpu_custom_call.1} parent=1 // pred_fallthru
      _
    %v38 = vld [vmem:[#allocation2] sm:$0xff]
    %v39 = vld [vmem:[#allocation5] sm:$0xff]
    %v40 = vld [vmem:[#allocation5 + $0x8] sm:$0xff]
    %v41 = vld [vmem:[#allocation5 + $0x10] sm:$0xff]
    %v42 = vld [vmem:[#allocation5 + $0x18] sm:$0xff]
    %v43 = vld [vmem:[#allocation5 + $0x20] sm:$0xff]
    %v44 = vld [vmem:[#allocation5 + $0x28] sm:$0xff]
    %v45 = vld [vmem:[#allocation5 + $0x30] sm:$0xff]
    %v46 = vld [vmem:[#allocation5 + $0x38] sm:$0xff]
    %v47 = vld [vmem:[#allocation5 + $0x40] sm:$0xff]
    %v48 = vld [vmem:[#allocation5 + $0x48] sm:$0xff]
    %v49 = vld [vmem:[#allocation5 + $0x50] sm:$0xff]
    %v50 = vld [vmem:[#allocation5 + $0x58] sm:$0xff]
    %v51 = vld [vmem:[#allocation5 + $0x60] sm:$0xff]
    %v52 = vld [vmem:[#allocation5 + $0x68] sm:$0xff]
    %v53 = vld [vmem:[#allocation5 + $0x70] sm:$0xff]
    %v54 = vld [vmem:[#allocation5 + $0x78] sm:$0xff]
    %v55 = vld [vmem:[#allocation5 + $0x80] sm:$0xff]
    %v56 = vld [vmem:[#allocation5 + $0x88] sm:$0xff]
    %v57 = vld [vmem:[#allocation5 + $0x90] sm:$0xff]
    %v58 = vld [vmem:[#allocation5 + $0x98] sm:$0xff]
    %v59 = vld [vmem:[#allocation5 + $0xa0] sm:$0xff]
    %v60 = vld [vmem:[#allocation5 + $0xa8] sm:$0xff]
    %v61 = vld [vmem:[#allocation5 + $0xb0] sm:$0xff]
    %v62 = vld [vmem:[#allocation5 + $0xb8] sm:$0xff]
    %v63 = vld [vmem:[#allocation5 + $0xc0] sm:$0xff]
    %v64 = vld [vmem:[#allocation5 + $0xc8] sm:$0xff]
    %v65 = vld [vmem:[#allocation5 + $0xd0] sm:$0xff]
    %v66 = vld [vmem:[#allocation5 + $0xd8] sm:$0xff]
    %v67 = vld [vmem:[#allocation5 + $0xe0] sm:$0xff]
    %v68 = vld [vmem:[#allocation5 + $0xe8] sm:$0xff]
    %v69 = vld [vmem:[#allocation5 + $0xf0] sm:$0xff]
    %v70 = vld [vmem:[#allocation5 + $0xf8] sm:$0xff]
    %v71 = vld [vmem:[#allocation5 + $0x100] sm:$0xff]
    %v72 = vld [vmem:[#allocation5 + $0x108] sm:$0xff]
    %v73 = vld [vmem:[#allocation5 + $0x110] sm:$0xff]
    %v74 = vld [vmem:[#allocation5 + $0x118] sm:$0xff]
    %v75 = vld [vmem:[#allocation5 + $0x120] sm:$0xff]
    %v76 = vld [vmem:[#allocation5 + $0x128] sm:$0xff]
    %v77 = vld [vmem:[#allocation5 + $0x130] sm:$0xff]
    %v78 = vld [vmem:[#allocation5 + $0x138] sm:$0xff]
    %v79 = vld [vmem:[#allocation5 + $0x140] sm:$0xff]
    %v80 = vld [vmem:[#allocation5 + $0x148] sm:$0xff]
    %v81 = vld [vmem:[#allocation5 + $0x150] sm:$0xff]
    %v82 = vld [vmem:[#allocation5 + $0x158] sm:$0xff]
    %v83 = vld [vmem:[#allocation5 + $0x160] sm:$0xff]
    %v84 = vld [vmem:[#allocation5 + $0x168] sm:$0xff]
    %v85 = vld [vmem:[#allocation5 + $0x170] sm:$0xff]
    %v86 = vld [vmem:[#allocation5 + $0x178] sm:$0xff]
    %v87 = vld [vmem:[#allocation5 + $0x180] sm:$0xff]
    %v88 = vld [vmem:[#allocation5 + $0x188] sm:$0xff]
    %v89 = vld [vmem:[#allocation5 + $0x190] sm:$0xff]
    %v90 = vld [vmem:[#allocation5 + $0x198] sm:$0xff]
    %v91 = vld [vmem:[#allocation5 + $0x1a0] sm:$0xff]
    %v92 = vld [vmem:[#allocation5 + $0x1a8] sm:$0xff]
    %v93 = vld [vmem:[#allocation5 + $0x1b0] sm:$0xff]
    %v94 = vld [vmem:[#allocation5 + $0x1b8] sm:$0xff]
    %v95 = vld [vmem:[#allocation5 + $0x1c0] sm:$0xff]
    %v96 = vld [vmem:[#allocation5 + $0x1c8] sm:$0xff]
    %v97 = vld [vmem:[#allocation5 + $0x1d0] sm:$0xff]
    %v98 = vld [vmem:[#allocation5 + $0x1d8] sm:$0xff]
    %v99 = vld [vmem:[#allocation5 + $0x1e0] sm:$0xff]
    %v100 = vld [vmem:[#allocation5 + $0x1e8] sm:$0xff]
    %v101 = vld [vmem:[#allocation5 + $0x1f0] sm:$0xff]
    %v102 = vld [vmem:[#allocation5 + $0x1f8] sm:$0xff]
    %103 = vmatprep.subr.mxu0 %v100
    %104 = vmatpush1.msra.mxu0 %v99
    %105 = vmatprep.subr.mxu0 %v96
    %106 = vmatpush1.msra.mxu0 %v95
    %107 = vmatprep.subr.mxu0 %v92
    %108 = vmatpush1.msra.mxu0 %v91
    %109 = vmatprep.subr.mxu0 %v88
    %110 = vmatpush1.msra.mxu0 %v87
    %111 = vmatprep.subr.mxu0 %v84
    %112 = vmatpush1.msra.mxu0 %v83
    %113 = vmatprep.subr.mxu0 %v80
    %114 = vmatpush1.msra.mxu0 %v79
    %115 = vmatprep.subr.mxu0 %v76
    %116 = vmatpush1.msra.mxu0 %v75
    %117 = vmatprep.subr.mxu0 %v72
    %118 = vmatpush1.msra.mxu0 %v71
    %119 = vmatprep.subr.mxu0 %v68
    %120 = vmatpush1.msra.mxu0 %v67
    %121 = vmatprep.subr.mxu0 %v64
    %122 = vmatpush1.msra.mxu0 %v63
    %123 = vmatprep.subr.mxu0 %v60
    %124 = vmatpush1.msra.mxu0 %v59
    %125 = vmatprep.subr.mxu0 %v56
    %126 = vmatpush1.msra.mxu0 %v55
    %127 = vmatprep.subr.mxu0 %v52
    %128 = vmatpush1.msra.mxu0 %v51
    %129 = vmatprep.subr.mxu0 %v48
    %130 = vmatpush1.msra.mxu0 %v47
    %131 = vmatprep.subr.mxu0 %v44
    %132 = vmatpush1.msra.mxu0 %v43
    %133 = vmatprep.subr.mxu0 %v40
    %134 = vmatpush1.msra.mxu0 %v39
    %135 = vmatprep.subr.mxu0 0.0
    %136 = vmatpush2.msra.mxu0 0.0
    %137 = vmatprep.subr.mxu0 0.0
    %138 = vmatpush2.msra.mxu0 0.0
    %139 = vmatprep.subr.mxu0 0.0
    %140 = vmatpush2.msra.mxu0 0.0
    %141 = vmatprep.subr.mxu0 0.0
    %142 = vmatpush2.msra.mxu0 0.0
    %143 = vmatprep.subr.mxu0 0.0
    %144 = vmatpush2.msra.mxu0 0.0
    %145 = vmatprep.subr.mxu0 0.0
    %146 = vmatpush2.msra.mxu0 0.0
    %147 = vmatprep.subr.mxu0 0.0
    %148 = vmatpush2.msra.mxu0 0.0
    %149 = vmatprep.subr.mxu0 0.0
    %150 = vmatpush2.msra.mxu0 0.0
    %151 = vmatprep.subr.mxu0 0.0
    %152 = vmatpush2.msra.mxu0 0.0
    %153 = vmatprep.subr.mxu0 0.0
    %154 = vmatpush2.msra.mxu0 0.0
    %155 = vmatprep.subr.mxu0 0.0
    %156 = vmatpush2.msra.mxu0 0.0
    %157 = vmatprep.subr.mxu0 0.0
    %158 = vmatpush2.msra.mxu0 0.0
    %159 = vmatprep.subr.mxu0 0.0
    %160 = vmatpush2.msra.mxu0 0.0
    %161 = vmatprep.subr.mxu0 0.0
    %162 = vmatpush2.msra.mxu0 0.0
    %163 = vmatprep.subr.mxu0 0.0
    %164 = vmatpush2.msra.mxu0 0.0
    %165 = vmatprep.subr.mxu0 0.0
    %166 = vmatpush2.msra.mxu0 0.0
    %167 = vmatprep.mubr.f32.mxu0 0.0
    %168 = vmatmul.mubr.f32.gmra.mxu0 %v38
    %v169 = vpop.f32.mrf.mxu0
    %v170 = vadd.f32 0.0, %v169
    %v171 = vpop.f32.mrf.mxu0
    %v172 = vadd.f32 0.0, %v171
    %173 = vdwg.mxu0
    %174 = vmatprep.subr.mxu0 %v102
    %175 = vmatpush1.msra.mxu0 %v101
    %176 = vmatprep.subr.mxu0 %v98
    %177 = vmatpush1.msra.mxu0 %v97
    %178 = vmatprep.subr.mxu0 %v94
    %179 = vmatpush1.msra.mxu0 %v93
    %180 = vmatprep.subr.mxu0 %v90
    %181 = vmatpush1.msra.mxu0 %v89
    %182 = vmatprep.subr.mxu0 %v86
    %183 = vmatpush1.msra.mxu0 %v85
    %184 = vmatprep.subr.mxu0 %v82
    %185 = vmatpush1.msra.mxu0 %v81
    %186 = vmatprep.subr.mxu0 %v78
    %187 = vmatpush1.msra.mxu0 %v77
    %188 = vmatprep.subr.mxu0 %v74
    %189 = vmatpush1.msra.mxu0 %v73
    %190 = vmatprep.subr.mxu0 %v70
    %191 = vmatpush1.msra.mxu0 %v69
    %192 = vmatprep.subr.mxu0 %v66
    %193 = vmatpush1.msra.mxu0 %v65
    %194 = vmatprep.subr.mxu0 %v62
    %195 = vmatpush1.msra.mxu0 %v61
    %196 = vmatprep.subr.mxu0 %v58
    %197 = vmatpush1.msra.mxu0 %v57
    %198 = vmatprep.subr.mxu0 %v54
    %199 = vmatpush1.msra.mxu0 %v53
    %200 = vmatprep.subr.mxu0 %v50
    %201 = vmatpush1.msra.mxu0 %v49
    %202 = vmatprep.subr.mxu0 %v46
    %203 = vmatpush1.msra.mxu0 %v45
    %204 = vmatprep.subr.mxu0 %v42
    %205 = vmatpush1.msra.mxu0 %v41
    %206 = vmatprep.subr.mxu0 0.0
    %207 = vmatpush2.msra.mxu0 0.0
    %208 = vmatprep.subr.mxu0 0.0
    %209 = vmatpush2.msra.mxu0 0.0
    %210 = vmatprep.subr.mxu0 0.0
    %211 = vmatpush2.msra.mxu0 0.0
    %212 = vmatprep.subr.mxu0 0.0
    %213 = vmatpush2.msra.mxu0 0.0
    %214 = vmatprep.subr.mxu0 0.0
    %215 = vmatpush2.msra.mxu0 0.0
    %216 = vmatprep.subr.mxu0 0.0
    %217 = vmatpush2.msra.mxu0 0.0
    %218 = vmatprep.subr.mxu0 0.0
    %219 = vmatpush2.msra.mxu0 0.0
    %220 = vmatprep.subr.mxu0 0.0
    %221 = vmatpush2.msra.mxu0 0.0
    %222 = vmatprep.subr.mxu0 0.0
    %223 = vmatpush2.msra.mxu0 0.0
    %224 = vmatprep.subr.mxu0 0.0
    %225 = vmatpush2.msra.mxu0 0.0
    %226 = vmatprep.subr.mxu0 0.0
    %227 = vmatpush2.msra.mxu0 0.0
    %228 = vmatprep.subr.mxu0 0.0
    %229 = vmatpush2.msra.mxu0 0.0
    %230 = vmatprep.subr.mxu0 0.0
    %231 = vmatpush2.msra.mxu0 0.0
    %232 = vmatprep.subr.mxu0 0.0
    %233 = vmatpush2.msra.mxu0 0.0
    %234 = vmatprep.subr.mxu0 0.0
    %235 = vmatpush2.msra.mxu0 0.0
    %236 = vmatprep.subr.mxu0 0.0
    %237 = vmatpush2.msra.mxu0 0.0
    %238 = vmatprep.mubr.f32.mxu0 0.0
    %239 = vmatmul.mubr.f32.gmra.mxu0 %v38
    %v240 = vpop.f32.mrf.mxu0
    %v241 = vadd.f32 0.0, %v240
    %v242 = vpop.f32.mrf.mxu0
    %v243 = vadd.f32 0.0, %v242
    %244 = vdwg.mxu0
    %245 = vst [vmem:[#allocation7] sm:$0xff] %v170
    %246 = vst [vmem:[#allocation7 + $0x8] sm:$0xff] %v172
    %247 = vst [vmem:[#allocation7 + $0x10] sm:$0xff] %v241
    %248 = vst [vmem:[#allocation7 + $0x18] sm:$0xff] %v243
    // Predicated region
    $region18: #{tpu_custom_call.1} parent=1 // pred_check
      _
    $region19: #{tpu_custom_call.1} parent=1 // pred_check_branch
      %250 = sbr.rel (0) target = $region21
    $region20: #{tpu_custom_call.1} parent=1 // pred_region
      %s252 = ssub.s32 512, 512
      %253 = vsyncadd [#allocation4], %s252
      %s255 = sshll.u32 [#allocation7], 4
      %s256 = int_to_ptr.vmem [resolvable:$true] %s255
      %258 = dma.vmem_to_hbm [thread:$0]  %s256, 512, %s2, [#allocation4]
    $region21: #{tpu_custom_call.1} parent=1 // pred_fallthru
      _
    // Predicated region
    $region22: #{tpu_custom_call.1} parent=1 // pred_check
      _
    $region23: #{tpu_custom_call.1} parent=1 // pred_check_branch
      %260 = sbr.rel (0) target = $region25
    $region24: #{tpu_custom_call.1} parent=1 // pred_region
      %261 = dma.done [#allocation4], 512
    $region25: #{tpu_custom_call.1} parent=1 // pred_fallthru
      _
    %262 = vsyncpa [#allocation3], 1
    %263 = vsyncpa [#allocation6], 1
    %264 = vsyncpa [#allocation4], 1

</llo_original>
